<compile_context>
chip_gen: v5e
topology: v5e:2x2
jax: 0.10.0
libtpu: 0.0.40
codegen_flags: <defaults>
</compile_context>

<pallas_src>
import math

import jax
import jax.numpy as jnp
from jax.experimental import pallas as pl
from jax.experimental.pallas import tpu as pltpu


def _round_up(x, m):
    return ((x + m - 1) // m) * m


def critic_mlp_kernel(low_ref, soc_ref, w1a_ref, w1b_ref, b1_ref,
                      w2_ref, b2_ref, w3_ref, b3_ref, o_ref):
    # Layer 1: Linear(S -> Hp) + ReLU, with the input concat fused:
    #   x @ W1 == low @ W1[:D_low] + soc @ W1[D_low:]
    h1 = (jnp.dot(low_ref[...], w1a_ref[...],
                  preferred_element_type=jnp.float32)
          + jnp.dot(soc_ref[...], w1b_ref[...],
                    preferred_element_type=jnp.float32)
          + b1_ref[...])
    h1 = jnp.maximum(h1, 0.0)
    # Layer 2: Linear(Hp -> Hp) + ReLU
    h2 = jnp.dot(h1, w2_ref[...],
                 preferred_element_type=jnp.float32) + b2_ref[...]
    h2 = jnp.maximum(h2, 0.0)
    # Layer 3: Linear(Hp -> 1) as a lane reduction (avoids a 1-wide MXU push).
    q = jnp.sum(h2 * w3_ref[...], axis=-1, keepdims=True) + b3_ref[...]
    o_ref[...] = q.astype(o_ref.dtype)


def critic_mlp(low, soc, kparams, *, tb_max=512):
    """3-layer critic MLP. `kparams` come from `prepare_params`."""
    w1a, w1b, b1, w2, b2, w3_row, b3 = kparams
    B, d_low = low.shape
    _, d_soc = soc.shape
    hp = w1a.shape[1]

    # Batch tile: multiple of 8, capped by the (padded) batch size.
    tb = min(tb_max, _round_up(B, 8))
    tb = _round_up(tb, 8)
    grid = (pl.cdiv(B, tb),)

    const2d = lambda i: (0, 0)
    row_spec = lambda d: pl.BlockSpec((tb, d), lambda i: (i, 0))

    weight_bytes = 4 * (w1a.size + w1b.size + b1.size + w2.size + b2.size
                        + w3_row.size + b3.size)
    flops = 2 * B * ((d_low + d_soc) * hp + hp * hp + hp)
    bytes_accessed = 4 * (B * (d_low + d_soc) + B) + weight_bytes

    return pl.pallas_call(
        critic_mlp_kernel,
        out_shape=jax.ShapeDtypeStruct((B, 1), jnp.float32),
        grid=grid,
        in_specs=[
            row_spec(d_low),                              # low_dim tile
            row_spec(d_soc),                              # social tile
            pl.BlockSpec(w1a.shape, const2d),             # resident weights
            pl.BlockSpec(w1b.shape, const2d),
            pl.BlockSpec(b1.shape, const2d),
            pl.BlockSpec(w2.shape, const2d),
            pl.BlockSpec(b2.shape, const2d),
            pl.BlockSpec(w3_row.shape, const2d),
            pl.BlockSpec(b3.shape, const2d),
        ],
        out_specs=pl.BlockSpec((tb, 1), lambda i: (i, 0)),
        compiler_params=pltpu.CompilerParams(
            dimension_semantics=("parallel",)),
        cost_estimate=pl.CostEstimate(
            flops=flops, transcendentals=0, bytes_accessed=bytes_accessed),
    )(low, soc, w1a, w1b, b1, w2, b2, w3_row, b3)


def prepare_params(raw_params, d_low):
    """Convert (w1,b1,w2,b2,w3,b3) into kernel layout.

    * splits W1 at d_low so the concat can be fused into the kernel,
    * zero-pads the hidden dim to a multiple of 128 (numerically exact),
    * reshapes W3 to a (1, Hp) row for the lane-reduction layer 3.
    """
    w1, b1, w2, b2, w3, b3 = raw_params
    s, h = w1.shape
    hp = _round_up(h, 128)
    pad_h = hp - h

    w1p = jnp.pad(w1, ((0, 0), (0, pad_h)))
    b1p = jnp.pad(b1.reshape(1, -1), ((0, 0), (0, pad_h)))
    w2p = jnp.pad(w2, ((0, pad_h), (0, pad_h)))
    b2p = jnp.pad(b2.reshape(1, -1), ((0, 0), (0, pad_h)))
    w3p = jnp.pad(w3.reshape(1, -1), ((0, 0), (0, pad_h)))   # (1, Hp)
    b3p = b3.reshape(1, 1)

    w1a = w1p[:d_low]          # (D_low, Hp)
    w1b = w1p[d_low:]          # (D_soc, Hp)
    return (w1a, w1b, b1p, w2p, b2p, w3p, b3p)


def init_linear(key, fan_in, fan_out):
    # Deterministic PyTorch-style init: U(-1/sqrt(fan_in), 1/sqrt(fan_in)).
    kw, kb = jax.random.split(key)
    bound = 1.0 / math.sqrt(fan_in)
    w = jax.random.uniform(kw, (fan_in, fan_out), jnp.float32, -bound, bound)
    b = jax.random.uniform(kb, (fan_out,), jnp.float32, -bound, bound)
    return w, b


def critic_network_forward(state, kparams, training=False):
    """Replicates CriticNetwork.forward with social_feature_encoder=None."""
    low_dim = state["low_dim_states"]          # (B, D_low)
    social = state["social_vehicles"]          # (B, N, F) or list of (N, F)
    if isinstance(social, (list, tuple)):
        social = jnp.stack(social, axis=0)
    B = low_dim.shape[0]
    # [e.reshape(1, -1) for e in social]; torch.cat(..., 0) -> (B, N*F).
    # The concat with low_dim is fused inside the kernel (no HBM round-trip).
    social_feature = social.reshape(B, -1)
    q = critic_mlp(low_dim, social_feature, kparams)
    aux_losses = {}
    return (q, aux_losses) if training else (q, {})


if __name__ == "__main__":
    key = jax.random.PRNGKey(0)

    # Small, module-consistent shapes.
    B = 8              # batch
    D_LOW = 16         # low-dim state features
    N_SOCIAL = 4       # social vehicles per sample
    F_SOCIAL = 4       # features per social vehicle
    STATE_SIZE = D_LOW + N_SOCIAL * F_SOCIAL   # 32
    HIDDEN = 32        # hidden_units

    k_low, k_soc, k1, k2, k3 = jax.random.split(key, 5)
    state = {
        "low_dim_states": jax.random.normal(k_low, (B, D_LOW), jnp.float32),
        "social_vehicles": jax.random.normal(
            k_soc, (B, N_SOCIAL, F_SOCIAL), jnp.float32),
    }

    w1, b1 = init_linear(k1, STATE_SIZE, HIDDEN)
    w2, b2 = init_linear(k2, HIDDEN, HIDDEN)
    w3, b3 = init_linear(k3, HIDDEN, 1)
    raw_params = (w1, b1, w2, b2, w3, b3)
    kparams = prepare_params(raw_params, D_LOW)

    q, aux = critic_network_forward(state, kparams, training=False)
    q = jax.block_until_ready(q)

    # Pure-JAX reference check against the UNPADDED original parameters.
    x = jnp.concatenate(
        [state["low_dim_states"], state["social_vehicles"].reshape(B, -1)],
        axis=-1)
    h1 = jnp.maximum(x @ w1 + b1, 0.0)
    h2 = jnp.maximum(h1 @ w2 + b2, 0.0)
    q_ref = h2 @ w3 + b3
    assert q.shape == (B, 1)
    assert jnp.allclose(q, q_ref, atol=1e-5, rtol=1e-5)

    print("KERNEL_OK")
</pallas_src>

<mosaic_0001>
module attributes {stable_mosaic.version = 11 : i64} {
  func.func @critic_mlp_kernel(%arg0: i32, %arg1: memref<8x16xf32, #tpu.memory_space<vmem>>, %arg2: memref<8x16xf32, #tpu.memory_space<vmem>>, %arg3: memref<16x128xf32, #tpu.memory_space<vmem>>, %arg4: memref<16x128xf32, #tpu.memory_space<vmem>>, %arg5: memref<1x128xf32, #tpu.memory_space<vmem>>, %arg6: memref<128x128xf32, #tpu.memory_space<vmem>>, %arg7: memref<1x128xf32, #tpu.memory_space<vmem>>, %arg8: memref<1x128xf32, #tpu.memory_space<vmem>>, %arg9: memref<1x1xf32, #tpu.memory_space<vmem>>, %arg10: memref<8x1xf32, #tpu.memory_space<vmem>>) attributes {dimension_semantics = [#tpu.dimension_semantics<parallel>], iteration_bounds = array<i64: 1>, scalar_prefetch = 0 : i64, scratch_operands = 0 : i64, tpu.core_type = #tpu.core_type<tc>, window_params = [{transform_indices = @transform_0, window_bounds = array<i64: 8, 16>}, {transform_indices = @transform_1, window_bounds = array<i64: 8, 16>}, {pipeline_mode = #tpu.pipeline_mode<synchronous>, transform_indices = @transform_2, window_bounds = array<i64: 16, 128>}, {pipeline_mode = #tpu.pipeline_mode<synchronous>, transform_indices = @transform_3, window_bounds = array<i64: 16, 128>}, {pipeline_mode = #tpu.pipeline_mode<synchronous>, transform_indices = @transform_4, window_bounds = array<i64: 1, 128>}, {pipeline_mode = #tpu.pipeline_mode<synchronous>, transform_indices = @transform_5, window_bounds = array<i64: 128, 128>}, {pipeline_mode = #tpu.pipeline_mode<synchronous>, transform_indices = @transform_6, window_bounds = array<i64: 1, 128>}, {pipeline_mode = #tpu.pipeline_mode<synchronous>, transform_indices = @transform_7, window_bounds = array<i64: 1, 128>}, {pipeline_mode = #tpu.pipeline_mode<synchronous>, transform_indices = @transform_8, window_bounds = array<i64: 1, 1>}, {transform_indices = @transform_9, window_bounds = array<i64: 8, 1>}]} {
    %c0 = arith.constant 0 : index
    %c0_0 = arith.constant 0 : index
    %0 = vector.load %arg1[%c0, %c0_0] : memref<8x16xf32, #tpu.memory_space<vmem>>, vector<8x16xf32>
    %c0_1 = arith.constant 0 : index
    %c0_2 = arith.constant 0 : index
    %1 = vector.load %arg3[%c0_1, %c0_2] : memref<16x128xf32, #tpu.memory_space<vmem>>, vector<16x128xf32>
    %cst = arith.constant dense<0.000000e+00> : vector<8x128xf32>
    %2 = tpu.matmul %0, %1, %cst {dimension_numbers = #tpu.dot_dimension_numbers<[1], [0], [0], [1], [0, 0, 1, 1], [], []>} : vector<8x16xf32>, vector<16x128xf32>, vector<8x128xf32> -> vector<8x128xf32>
    %c0_3 = arith.constant 0 : index
    %c0_4 = arith.constant 0 : index
    %3 = vector.load %arg2[%c0_3, %c0_4] : memref<8x16xf32, #tpu.memory_space<vmem>>, vector<8x16xf32>
    %c0_5 = arith.constant 0 : index
    %c0_6 = arith.constant 0 : index
    %4 = vector.load %arg4[%c0_5, %c0_6] : memref<16x128xf32, #tpu.memory_space<vmem>>, vector<16x128xf32>
    %cst_7 = arith.constant dense<0.000000e+00> : vector<8x128xf32>
    %5 = tpu.matmul %3, %4, %cst_7 {dimension_numbers = #tpu.dot_dimension_numbers<[1], [0], [0], [1], [0, 0, 1, 1], [], []>} : vector<8x16xf32>, vector<16x128xf32>, vector<8x128xf32> -> vector<8x128xf32>
    %6 = arith.addf %2, %5 : vector<8x128xf32>
    %c0_8 = arith.constant 0 : index
    %c0_9 = arith.constant 0 : index
    %7 = vector.load %arg5[%c0_8, %c0_9] : memref<1x128xf32, #tpu.memory_space<vmem>>, vector<1x128xf32>
    %8 = vector.broadcast %7 : vector<1x128xf32> to vector<8x128xf32>
    %9 = arith.addf %6, %8 : vector<8x128xf32>
    %cst_10 = arith.constant 0.000000e+00 : f32
    %10 = vector.broadcast %cst_10 : f32 to vector<8x128xf32>
    %11 = arith.maximumf %9, %10 : vector<8x128xf32>
    %c0_11 = arith.constant 0 : index
    %c0_12 = arith.constant 0 : index
    %12 = vector.load %arg6[%c0_11, %c0_12] : memref<128x128xf32, #tpu.memory_space<vmem>>, vector<128x128xf32>
    %cst_13 = arith.constant dense<0.000000e+00> : vector<8x128xf32>
    %13 = tpu.matmul %11, %12, %cst_13 {dimension_numbers = #tpu.dot_dimension_numbers<[1], [0], [0], [1], [0, 0, 1, 1], [], []>} : vector<8x128xf32>, vector<128x128xf32>, vector<8x128xf32> -> vector<8x128xf32>
    %c0_14 = arith.constant 0 : index
    %c0_15 = arith.constant 0 : index
    %14 = vector.load %arg7[%c0_14, %c0_15] : memref<1x128xf32, #tpu.memory_space<vmem>>, vector<1x128xf32>
    %15 = vector.broadcast %14 : vector<1x128xf32> to vector<8x128xf32>
    %16 = arith.addf %13, %15 : vector<8x128xf32>
    %cst_16 = arith.constant 0.000000e+00 : f32
    %17 = vector.broadcast %cst_16 : f32 to vector<8x128xf32>
    %18 = arith.maximumf %16, %17 : vector<8x128xf32>
    %c0_17 = arith.constant 0 : index
    %c0_18 = arith.constant 0 : index
    %19 = vector.load %arg8[%c0_17, %c0_18] : memref<1x128xf32, #tpu.memory_space<vmem>>, vector<1x128xf32>
    %20 = vector.broadcast %19 : vector<1x128xf32> to vector<8x128xf32>
    %21 = arith.mulf %18, %20 : vector<8x128xf32>
    %cst_19 = arith.constant dense<0.000000e+00> : vector<8xf32>
    %22 = vector.multi_reduction <add>, %21, %cst_19 [1] : vector<8x128xf32> to vector<8xf32>
    %23 = vector.shape_cast %22 : vector<8xf32> to vector<8x1xf32>
    %c0_20 = arith.constant 0 : index
    %c0_21 = arith.constant 0 : index
    %24 = vector.load %arg9[%c0_20, %c0_21] : memref<1x1xf32, #tpu.memory_space<vmem>>, vector<1x1xf32>
    %25 = vector.broadcast %24 : vector<1x1xf32> to vector<8x1xf32>
    %26 = arith.addf %23, %25 : vector<8x1xf32>
    %c0_22 = arith.constant 0 : index
    %c0_23 = arith.constant 0 : index
    %27 = vector.load %arg10[%c0_22, %c0_23] : memref<8x1xf32, #tpu.memory_space<vmem>>, vector<8x1xf32>
    tpu.vector_store %arg10[%c0_22, %c0_23], %26 {strides = array<i32>} : memref<8x1xf32, #tpu.memory_space<vmem>>, vector<8x1xf32>,
    return
  }
  func.func @transform_0(%arg0: i32) -> (i32, i32) {
    %c0_i32 = arith.constant 0 : i32
    %c0_i32_0 = arith.constant 0 : i32
    return %arg0, %c0_i32 : i32, i32
  }
  func.func @transform_1(%arg0: i32) -> (i32, i32) {
    %c0_i32 = arith.constant 0 : i32
    %c0_i32_0 = arith.constant 0 : i32
    return %arg0, %c0_i32 : i32, i32
  }
  func.func @transform_2(%arg0: i32) -> (i32, i32) {
    %c0_i32 = arith.constant 0 : i32
    %c0_i32_0 = arith.constant 0 : i32
    %c0_i32_1 = arith.constant 0 : i32
    return %c0_i32, %c0_i32_0 : i32, i32
  }
  func.func @transform_3(%arg0: i32) -> (i32, i32) {
    %c0_i32 = arith.constant 0 : i32
    %c0_i32_0 = arith.constant 0 : i32
    %c0_i32_1 = arith.constant 0 : i32
    return %c0_i32, %c0_i32_0 : i32, i32
  }
  func.func @transform_4(%arg0: i32) -> (i32, i32) {
    %c0_i32 = arith.constant 0 : i32
    %c0_i32_0 = arith.constant 0 : i32
    %c0_i32_1 = arith.constant 0 : i32
    return %c0_i32, %c0_i32_0 : i32, i32
  }
  func.func @transform_5(%arg0: i32) -> (i32, i32) {
    %c0_i32 = arith.constant 0 : i32
    %c0_i32_0 = arith.constant 0 : i32
    %c0_i32_1 = arith.constant 0 : i32
    return %c0_i32, %c0_i32_0 : i32, i32
  }
  func.func @transform_6(%arg0: i32) -> (i32, i32) {
    %c0_i32 = arith.constant 0 : i32
    %c0_i32_0 = arith.constant 0 : i32
    %c0_i32_1 = arith.constant 0 : i32
    return %c0_i32, %c0_i32_0 : i32, i32
  }
  func.func @transform_7(%arg0: i32) -> (i32, i32) {
    %c0_i32 = arith.constant 0 : i32
    %c0_i32_0 = arith.constant 0 : i32
    %c0_i32_1 = arith.constant 0 : i32
    return %c0_i32, %c0_i32_0 : i32, i32
  }
  func.func @transform_8(%arg0: i32) -> (i32, i32) {
    %c0_i32 = arith.constant 0 : i32
    %c0_i32_0 = arith.constant 0 : i32
    %c0_i32_1 = arith.constant 0 : i32
    return %c0_i32, %c0_i32_0 : i32, i32
  }
  func.func @transform_9(%arg0: i32) -> (i32, i32) {
    %c0_i32 = arith.constant 0 : i32
    %c0_i32_0 = arith.constant 0 : i32
    return %arg0, %c0_i32 : i32, i32
  }
}

</mosaic_0001>

<llo_original>
// kernel: tpu_custom_call.1
$region0: #{tpu_custom_call.1}
  #allocation0 [shape = 'u32[]', space=smem, size = 0x4, offset = 0x4, fixed_abs, tag = 'smem constant byte address 0x4 - core index']
  #allocation1 [shape = 'u32[72,128]{1,0:T(1,128)}', space=vmem, size = 0x9000, scoped, tag = 'internal scratch']
  #allocation2 [shape = 'f32[1,1]{1,0:T(1,128)S(1)}', space=vmem, size = 0x200, scoped, tag = 'scoped memory for tpu_custom_call.1']
  %s0 = inlined_call_operand.hbm [shape: f32[8,16], index: 0, kind: input, shape index: {}]
  %s1 = inlined_call_operand.hbm [shape: f32[8,16], index: 1, kind: input, shape index: {}]
  %s2 = inlined_call_operand.hbm [shape: f32[16,128], index: 2, kind: input, shape index: {}]
  %s3 = inlined_call_operand.hbm [shape: f32[16,128], index: 3, kind: input, shape index: {}]
  %s4 = inlined_call_operand.vmem [shape: f32[1,128], index: 4, kind: input, shape index: {}]
  %s5 = inlined_call_operand.hbm [shape: f32[128,128], index: 5, kind: input, shape index: {}]
  %s6 = inlined_call_operand.vmem [shape: f32[1,128], index: 6, kind: input, shape index: {}]
  %s7 = inlined_call_operand.vmem [shape: f32[1,128], index: 7, kind: input, shape index: {}]
  %s8 = inlined_call_operand.<no memory space> [shape: f32[1,1], index: 8, kind: input, shape index: {}]
  %s9 = inlined_call_operand.vmem [shape: f32[8,1], index: 9, kind: output, shape index: {}]
  %s10 = sld [smem:[#allocation0]]
  $region66: #{tpu_custom_call.1} parent=0
    _
  %s12 = ssub.s32 1, %s10
  %s13 = scalar_select 0, %s12, %s10
  %v14 = vstv %s8
  %15 = vst [vmem:[#allocation2] sm:$0x1] %v14
  $region1: #{tpu_custom_call.1} parent=0
    #allocation3 [shape = 'u8[4096]{0}', space=vmem, size = 0x1000, scoped, tag = 'input window, operand 0, single buffered']
    #allocation4 [shape = 's32[1]{0}', space=sflag, size = 0x4, scoped, tag = 'scoped memory for tpu_custom_call.1']
    #allocation5 [shape = 'u8[4096]{0}', space=vmem, size = 0x1000, scoped, tag = 'input window, operand 1, single buffered']
    #allocation6 [shape = 's32[1]{0}', space=sflag, size = 0x4, scoped, tag = 'scoped memory for tpu_custom_call.1']
    #allocation7 [shape = 'u8[8192]{0}', space=vmem, size = 0x2000, scoped, tag = 'input window, operand 2, single buffered']
    #allocation8 [shape = 'u8[8192]{0}', space=vmem, size = 0x2000, scoped, tag = 'input window, operand 3, single buffered']
    #allocation9 [shape = 's32[1]{0}', space=sflag, size = 0x4, scoped, tag = 'scoped memory for tpu_custom_call.1']
    #allocation10 [shape = 'u8[65536]{0}', space=vmem, size = 0x10000, scoped, tag = 'input window, operand 5, single buffered']
    %16 = vsyncpa [#allocation4], 0
    %17 = vsyncpa [#allocation6], 0
    %18 = vsyncpa [#allocation9], 0
    // Predicated region
    $region2: #{tpu_custom_call.1} parent=1 // pred_check
      _
    $region3: #{tpu_custom_call.1} parent=1 // pred_check_branch
      %20 = sbr.rel (0) target = $region5
    $region4: #{tpu_custom_call.1} parent=1 // pred_region
      %22 = vsyncadd [#allocation4], 0
      %s24 = sshll.u32 %s0, 4
      %s25 = int_to_ptr.hbm [resolvable:$true] %s24
      %s26 = sshll.u32 [#allocation3], 4
      %s27 = int_to_ptr.vmem [resolvable:$true] %s26
      %29 = dma.hbm_to_vmem [thread:$0]  %s25, 128, %s27, [#allocation4]
    $region5: #{tpu_custom_call.1} parent=1 // pred_fallthru
      _
    // Predicated region
    $region6: #{tpu_custom_call.1} parent=1 // pred_check
      _
    $region7: #{tpu_custom_call.1} parent=1 // pred_check_branch
      %31 = sbr.rel (0) target = $region9
    $region8: #{tpu_custom_call.1} parent=1 // pred_region
      %33 = vsyncadd [#allocation6], 0
      %s35 = sshll.u32 %s1, 4
      %s36 = int_to_ptr.hbm [resolvable:$true] %s35
      %s37 = sshll.u32 [#allocation5], 4
      %s38 = int_to_ptr.vmem [resolvable:$true] %s37
      %40 = dma.hbm_to_vmem [thread:$0]  %s36, 128, %s38, [#allocation6]
    $region9: #{tpu_custom_call.1} parent=1 // pred_fallthru
      _
    // Predicated region
    $region10: #{tpu_custom_call.1} parent=1 // pred_check
      _
    $region11: #{tpu_custom_call.1} parent=1 // pred_check_branch
      %42 = sbr.rel (0) target = $region13
    $region12: #{tpu_custom_call.1} parent=1 // pred_region
      %44 = vsyncadd [#allocation6], 0
      %s45 = sshll.u32 %s2, 4
      %s46 = int_to_ptr.hbm [resolvable:$true] %s45
      %s47 = sshll.u32 [#allocation7], 4
      %s48 = int_to_ptr.vmem [resolvable:$true] %s47
      %53 = dma.hbm_to_vmem [thread:$0]  %s46, 256, %s48, [#allocation6], 128, 128, 8
    $region13: #{tpu_custom_call.1} parent=1 // pred_fallthru
      _
    // Predicated region
    $region14: #{tpu_custom_call.1} parent=1 // pred_check
      _
    $region15: #{tpu_custom_call.1} parent=1 // pred_check_branch
      %55 = sbr.rel (0) target = $region17
    $region16: #{tpu_custom_call.1} parent=1 // pred_region
      %57 = vsyncadd [#allocation9], 0
      %s58 = sshll.u32 %s3, 4
      %s59 = int_to_ptr.hbm [resolvable:$true] %s58
      %s60 = sshll.u32 [#allocation8], 4
      %s61 = int_to_ptr.vmem [resolvable:$true] %s60
      %66 = dma.hbm_to_vmem [thread:$0]  %s59, 256, %s61, [#allocation9], 128, 128, 8
    $region17: #{tpu_custom_call.1} parent=1 // pred_fallthru
      _
    // Predicated region
    $region18: #{tpu_custom_call.1} parent=1 // pred_check
      _
    $region19: #{tpu_custom_call.1} parent=1 // pred_check_branch
      %68 = sbr.rel (0) target = $region21
    $region20: #{tpu_custom_call.1} parent=1 // pred_region
      _
    $region21: #{tpu_custom_call.1} parent=1 // pred_fallthru
      _
    // Predicated region
    $region22: #{tpu_custom_call.1} parent=1 // pred_check
      _
    $region23: #{tpu_custom_call.1} parent=1 // pred_check_branch
      %70 = sbr.rel (0) target = $region25
    $region24: #{tpu_custom_call.1} parent=1 // pred_region
      %72 = vsyncadd [#allocation9], 0
      %s73 = sshll.u32 %s5, 4
      %s74 = int_to_ptr.hbm [resolvable:$true] %s73
      %s75 = sshll.u32 [#allocation10], 4
      %s76 = int_to_ptr.vmem [resolvable:$true] %s75
      %81 = dma.hbm_to_vmem [thread:$0]  %s74, 2048, %s76, [#allocation9], 128, 128, 8
    $region25: #{tpu_custom_call.1} parent=1 // pred_fallthru
      _
    // Predicated region
    $region26: #{tpu_custom_call.1} parent=1 // pred_check
      _
    $region27: #{tpu_custom_call.1} parent=1 // pred_check_branch
      %83 = sbr.rel (0) target = $region29
    $region28: #{tpu_custom_call.1} parent=1 // pred_region
      _
    $region29: #{tpu_custom_call.1} parent=1 // pred_fallthru
      _
    // Predicated region
    $region30: #{tpu_custom_call.1} parent=1 // pred_check
      _
    $region31: #{tpu_custom_call.1} parent=1 // pred_check_branch
      %85 = sbr.rel (0) target = $region33
    $region32: #{tpu_custom_call.1} parent=1 // pred_region
      _
    $region33: #{tpu_custom_call.1} parent=1 // pred_fallthru
      _
    // Predicated region
    $region34: #{tpu_custom_call.1} parent=1 // pred_check
      _
    $region35: #{tpu_custom_call.1} parent=1 // pred_check_branch
      %87 = sbr.rel (0) target = $region37
    $region36: #{tpu_custom_call.1} parent=1 // pred_region
      _
    $region37: #{tpu_custom_call.1} parent=1 // pred_fallthru
      _
    // Predicated region
    $region38: #{tpu_custom_call.1} parent=1 // pred_check
      _
    $region39: #{tpu_custom_call.1} parent=1 // pred_check_branch
      %89 = sbr.rel (0) target = $region41
    $region40: #{tpu_custom_call.1} parent=1 // pred_region
      %91 = dma.done [#allocation4], 128
    $region41: #{tpu_custom_call.1} parent=1 // pred_fallthru
      _
    // Predicated region
    $region42: #{tpu_custom_call.1} parent=1 // pred_check
      _
    $region43: #{tpu_custom_call.1} parent=1 // pred_check_branch
      %93 = sbr.rel (0) target = $region45
    $region44: #{tpu_custom_call.1} parent=1 // pred_region
      %95 = dma.done [#allocation6], 128
    $region45: #{tpu_custom_call.1} parent=1 // pred_fallthru
      _
    // Predicated region
    $region46: #{tpu_custom_call.1} parent=1 // pred_check
      _
    $region47: #{tpu_custom_call.1} parent=1 // pred_check_branch
      %97 = sbr.rel (0) target = $region49
    $region48: #{tpu_custom_call.1} parent=1 // pred_region
      %99 = dma.done [#allocation6], 256
    $region49: #{tpu_custom_call.1} parent=1 // pred_fallthru
      _
    // Predicated region
    $region50: #{tpu_custom_call.1} parent=1 // pred_check
      _
    $region51: #{tpu_custom_call.1} parent=1 // pred_check_branch
      %101 = sbr.rel (0) target = $region53
    $region52: #{tpu_custom_call.1} parent=1 // pred_region
      %103 = dma.done [#allocation9], 256
    $region53: #{tpu_custom_call.1} parent=1 // pred_fallthru
      _
    // Predicated region
    $region54: #{tpu_custom_call.1} parent=1 // pred_check
      _
    $region55: #{tpu_custom_call.1} parent=1 // pred_check_branch
      %105 = sbr.rel (0) target = $region57
    $region56: #{tpu_custom_call.1} parent=1 // pred_region
      %107 = dma.done [#allocation9], 2048
    $region57: #{tpu_custom_call.1} parent=1 // pred_fallthru
      _
    %v108 = vld [vmem:[#allocation3] sm:$0xff]
    %v109 = vld [vmem:[#allocation7] sm:$0xff]
    %v110 = vld [vmem:[#allocation7 + $0x8] sm:$0xff]
    %v111 = vld [vmem:[#allocation5] sm:$0xff]
    %v112 = vld [vmem:[#allocation8] sm:$0xff]
    %v113 = vld [vmem:[#allocation8 + $0x8] sm:$0xff]
    %vm114 = vcmask 130048
    %v116 = vsel %vm114, %v111, 0
    %118 = vmatpush.msra.mxu0 0.0
    %119 = vmatpush.msra.mxu0 0.0
    %120 = vmatpush.msra.mxu0 0.0
    %121 = vmatpush.msra.mxu0 0.0
    %122 = vmatpush.msra.mxu0 0.0
    %123 = vmatpush.msra.mxu0 0.0
    %124 = vmatpush.msra.mxu0 0.0
    %125 = vmatpush.msra.mxu0 0.0
    %126 = vmatpush.msra.mxu0 0.0
    %127 = vmatpush.msra.mxu0 0.0
    %128 = vmatpush.msra.mxu0 0.0
    %129 = vmatpush.msra.mxu0 0.0
    %130 = vmatpush.msra.mxu0 0.0
    %131 = vmatpush.msra.mxu0 0.0
    %132 = vmatpush.msra.mxu0 %v113
    %133 = vmatpush.msra.mxu0 %v112
    %134 = vmatmul.f32.gmra.mxu0 %v116
    %v135 = vpop.f32.mrf.mxu0
    %v136 = vadd.f32 0.0, %v135
    %137 = vdwg.mxu0
    %v139 = vsel %vm114, %v108, 0
    %141 = vmatpush.msra.mxu0 0.0
    %142 = vmatpush.msra.mxu0 0.0
    %143 = vmatpush.msra.mxu0 0.0
    %144 = vmatpush.msra.mxu0 0.0
    %145 = vmatpush.msra.mxu0 0.0
    %146 = vmatpush.msra.mxu0 0.0
    %147 = vmatpush.msra.mxu0 0.0
    %148 = vmatpush.msra.mxu0 0.0
    %149 = vmatpush.msra.mxu0 0.0
    %150 = vmatpush.msra.mxu0 0.0
    %151 = vmatpush.msra.mxu0 0.0
    %152 = vmatpush.msra.mxu0 0.0
    %153 = vmatpush.msra.mxu0 0.0
    %154 = vmatpush.msra.mxu0 0.0
    %155 = vmatpush.msra.mxu0 %v110
    %156 = vmatpush.msra.mxu0 %v109
    %157 = vmatmul.f32.gmra.mxu0 %v139
    %v158 = vpop.f32.mrf.mxu0
    %v159 = vadd.f32 %v136, %v158
    %160 = vdwg.mxu0
    %v161 = vld [vmem:[%s4] sm:$0x1]
    %v163 = vperm.slane %v161, 0
    %v165 = vadd.f32 %v159, %v163
    %v166 = vmax.f32 %v165, 0.0
    %v167 = vld [vmem:[#allocation10] sm:$0xff]
    %v168 = vld [vmem:[#allocation10 + $0x8] sm:$0xff]
    %v169 = vld [vmem:[#allocation10 + $0x10] sm:$0xff]
    %v170 = vld [vmem:[#allocation10 + $0x18] sm:$0xff]
    %v171 = vld [vmem:[#allocation10 + $0x20] sm:$0xff]
    %v172 = vld [vmem:[#allocation10 + $0x28] sm:$0xff]
    %v173 = vld [vmem:[#allocation10 + $0x30] sm:$0xff]
    %v174 = vld [vmem:[#allocation10 + $0x38] sm:$0xff]
    %v175 = vld [vmem:[#allocation10 + $0x40] sm:$0xff]
    %v176 = vld [vmem:[#allocation10 + $0x48] sm:$0xff]
    %v177 = vld [vmem:[#allocation10 + $0x50] sm:$0xff]
    %v178 = vld [vmem:[#allocation10 + $0x58] sm:$0xff]
    %v179 = vld [vmem:[#allocation10 + $0x60] sm:$0xff]
    %v180 = vld [vmem:[#allocation10 + $0x68] sm:$0xff]
    %v181 = vld [vmem:[#allocation10 + $0x70] sm:$0xff]
    %v182 = vld [vmem:[#allocation10 + $0x78] sm:$0xff]
    %v183 = vld [vmem:[%s6] sm:$0x1]
    %v185 = vperm.slane %v183, 0
    %187 = vmatpush.msra.mxu0 %v182
    %188 = vmatpush.msra.mxu0 %v181
    %189 = vmatpush.msra.mxu0 %v180
    %190 = vmatpush.msra.mxu0 %v179
    %191 = vmatpush.msra.mxu0 %v178
    %192 = vmatpush.msra.mxu0 %v177
    %193 = vmatpush.msra.mxu0 %v176
    %194 = vmatpush.msra.mxu0 %v175
    %195 = vmatpush.msra.mxu0 %v174
    %196 = vmatpush.msra.mxu0 %v173
    %197 = vmatpush.msra.mxu0 %v172
    %198 = vmatpush.msra.mxu0 %v171
    %199 = vmatpush.msra.mxu0 %v170
    %200 = vmatpush.msra.mxu0 %v169
    %201 = vmatpush.msra.mxu0 %v168
    %202 = vmatpush.msra.mxu0 %v167
    %203 = vmatmul.f32.gmra.mxu0 %v166
    %v204 = vpop.f32.mrf.mxu0
    %v205 = vadd.f32 %v185, %v204
    %206 = vdwg.mxu0
    %v207 = vmax.f32 %v205, 0.0
    %v208 = vld [vmem:[%s7] sm:$0x1]
    %v210 = vperm.slane %v208, 0
    %v212 = vmul.f32 %v207, %v210
    %213 = vadd.xlane.f32.xlu0 %v212
    %v214 = vpop.xlane.xlu0 %213
    %v215 = vld [vmem:[#allocation2] sm:$0x1]
    %v217 = vperm.slane %v215, 0
    %v219 = vadd.f32 %v214, %v217
    %vm220 = vcmask 7168
    %221 = vst.msk [vmem:[%s9] sm:$0xff] %vm220, %v219
    // Predicated region
    $region58: #{tpu_custom_call.1} parent=1 // pred_check
      _
    $region59: #{tpu_custom_call.1} parent=1 // pred_check_branch
      %223 = sbr.rel (0) target = $region61
    $region60: #{tpu_custom_call.1} parent=1 // pred_region
      _
    $region61: #{tpu_custom_call.1} parent=1 // pred_fallthru
      _
    // Predicated region
    $region62: #{tpu_custom_call.1} parent=1 // pred_check
      _
    $region63: #{tpu_custom_call.1} parent=1 // pred_check_branch
      %225 = sbr.rel (0) target = $region65
    $region64: #{tpu_custom_call.1} parent=1 // pred_region
      _
    $region65: #{tpu_custom_call.1} parent=1 // pred_fallthru
      _
    %226 = vsyncpa [#allocation4], 1
    %227 = vsyncpa [#allocation6], 1
    %228 = vsyncpa [#allocation9], 1

</llo_original>
